<compile_context>
chip_gen: v6e
topology: v6e:2x2x1
jax: 0.10.0
libtpu: 0.0.40
codegen_flags: <defaults>
</compile_context>

<pallas_src>
import numpy as np
import jax
import jax.numpy as jnp
from jax import lax
from jax.experimental import pallas as pl
from jax.experimental.pallas import tpu as pltpu

_LANES = 128
_HALO_ROWS = 8                      # context rows above/below each block (vreg aligned)
_DEFAULT_BLOCK_ROWS = 2048          # data rows per grid block (multiple of 8)


def _round_up(v, m):
    return ((v + m - 1) // m) * m


def _make_adaptive_filter_kernel(k1, k2, n, block_rows, uniform_w2):
    rows = block_rows + 2 * _HALO_ROWS       # rows in one input block
    left1 = (k1 - 1) // 2                    # torch 'same': left pad = (k-1)//2
    left2 = (k2 - 1) // 2
    data_start = _HALO_ROWS * _LANES         # flat offset of signal element 0

    def kernel(params_ref, w1_ref, w2_ref, x_ref, out_ref):
        q_lo = params_ref[0]        # 5th percentile
        q_hi = params_ref[1]        # 95th percentile
        b1 = params_ref[2]          # smooth_filtKH bias
        alpha = params_ref[3]       # PReLU slope
        b2 = params_ref[4]          # smooth_filt1 bias

        lane = lax.broadcasted_iota(jnp.int32, (rows, _LANES), 1)

        def shift(sig, s, up=None, down=None):
            # Value of `sig` at flat index f+s for the row-major (rows, 128)
            # layout, |s| < 128.  One lane roll + one select; `up` (row r+1
            # view) / `down` (row r-1 view) are hoisted by the caller when the
            # source is reused.  Wrap-around only pollutes the outermost halo
            # rows, which are never consumed for the block's data rows.
            if s == 0:
                return sig
            if s > 0:
                if up is None:
                    up = pltpu.roll(sig, shift=rows - 1, axis=0)
                pre = jnp.where(lane >= s, sig, up)
                return pltpu.roll(pre, shift=_LANES - s, axis=1)
            t = -s
            if down is None:
                down = pltpu.roll(sig, shift=1, axis=0)
            pre = jnp.where(lane < _LANES - t, sig, down)
            return pltpu.roll(pre, shift=t, axis=1)

        x = x_ref[...]

        # Global validity of each position in this block: everything outside
        # the flattened signal must act as 'same' zero padding.
        blk = pl.program_id(0)
        row = lax.broadcasted_iota(jnp.int32, (rows, _LANES), 0)
        gflat = (blk * block_rows + row) * _LANES + lane
        valid = jnp.logical_and(gflat >= data_start, gflat < data_start + n)

        # Quantile normalisation (scalar reciprocal computed once).
        inv_range = 1.0 / (q_hi - q_lo)
        x_norm = jnp.where(valid, (x - q_lo) * inv_range, 0.0)

        # ---- smooth_filtKH: k1-tap 'same' cross-correlation, bias, PReLU ----
        x_up = pltpu.roll(x_norm, shift=rows - 1, axis=0)
        x_down = pltpu.roll(x_norm, shift=1, axis=0)
        acc1 = w1_ref[0] * shift(x_norm, -left1, up=x_up, down=x_down)
        for k in range(1, k1):
            acc1 = acc1 + w1_ref[k] * shift(x_norm, k - left1, up=x_up, down=x_down)
        y = acc1 + b1
        y = jnp.where(y >= 0.0, y, alpha * y)                   # PReLU
        # conv2 must see zeros outside the signal ('same' padding); in-block
        # halo rows keep the (globally valid) neighbour values it needs.
        y = jnp.where(valid, y, 0.0)

        # ---- smooth_filt1: k2-tap 'same' cross-correlation -------------------
        if uniform_w2:
            # Frozen uniform box filter via log-step sliding-window sums:
            #   S_m(f) = sum_{t=0..m-1} y(f+t)   built by doubling, then
            #   S_k2(f) = sum over set bits p of k2 of S_p(f + running offset).
            sums = {1: y}
            ups = {}

            def shift_sum(key, s):
                if s == 0:
                    return sums[key]
                if key not in ups:              # hoist the sublane roll per source
                    ups[key] = pltpu.roll(sums[key], shift=rows - 1, axis=0)
                return shift(sums[key], s, up=ups[key])

            m = 1
            while 2 * m <= k2:
                sums[2 * m] = sums[m] + shift_sum(m, m)
                m *= 2
            total = None
            off = 0
            for p in sorted(sums, reverse=True):
                if k2 & p:
                    term = shift_sum(p, off)
                    total = term if total is None else total + term
                    off += p
            z = shift(total, -left2) * w2_ref[0] + b2
        else:
            # General per-tap path (only if smooth_filt1 weights are not uniform).
            # TODO(synk): for very large k2 switch to lax.fori_loop(unroll=8)
            # with SMEM-indexed weights to bound vreg live ranges.
            y_up = pltpu.roll(y, shift=rows - 1, axis=0)
            y_down = pltpu.roll(y, shift=1, axis=0)
            acc2 = w2_ref[0] * shift(y, -left2, up=y_up, down=y_down)
            for k in range(1, k2):
                acc2 = acc2 + w2_ref[k] * shift(y, k - left2, up=y_up, down=y_down)
            z = acc2 + b2

        # Keep only the block's data rows (vreg-aligned slice; halo discarded).
        out_ref[...] = z[_HALO_ROWS:_HALO_ROWS + block_rows, :]

    return kernel


def adaptive_filter_forward(x, *, w1, b1, alpha, w2, b2, size,
                            uniform_w2=True, block_rows=_DEFAULT_BLOCK_ROWS):
    """Pallas implementation of AdaptiveFilter.forward(x). Returns (numel(x), 1)."""
    k1 = int(size)
    k2 = int(size) * 4 + 1
    assert w1.shape[0] == k1 and w2.shape[0] == k2
    # All flat shifts (conv taps, box-filter offsets) must fit in one lane row.
    assert k2 - 1 < _LANES, "size too large: flat shifts must stay below 128 lanes"

    # smooth_filt1 weights are frozen uniform in the module; verify that when
    # they are concrete so the box-filter fast path is never silently wrong.
    if uniform_w2:
        try:
            w2_host = np.asarray(jax.device_get(w2))
            uniform_w2 = bool(np.all(w2_host == w2_host.flat[0]))
        except Exception:           # abstract under jit: trust the frozen init
            pass

    x_flat = jnp.reshape(x, (-1,)).astype(jnp.float32)
    n = int(x_flat.shape[0])

    # torch.quantile equivalent (sort-based, linear interpolation), kept in XLA.
    q_lo = jnp.quantile(x_flat, 0.05)
    q_hi = jnp.quantile(x_flat, 0.95)
    params = jnp.stack([q_lo, q_hi,
                        jnp.asarray(b1, dtype=jnp.float32),
                        jnp.asarray(alpha, dtype=jnp.float32),
                        jnp.asarray(b2, dtype=jnp.float32)]).astype(jnp.float32)

    # ---- lane-dense layout + overlapping row-block windows --------------------
    r_data = -(-n // _LANES)                              # data rows
    br = min(_round_up(block_rows, 8), _round_up(r_data, 8))
    nb = -(-r_data // br)                                 # grid blocks
    rows_blk = br + 2 * _HALO_ROWS                        # rows per input block
    rows_glob = _HALO_ROWS + nb * br + _HALO_ROWS
    pad_back = rows_glob * _LANES - n - _HALO_ROWS * _LANES
    x2d = jnp.pad(x_flat, (_HALO_ROWS * _LANES, pad_back)).reshape(rows_glob, _LANES)
    # Each block gets a contiguous (rows_blk, 128) slab with ±8 halo rows
    # duplicated in HBM so the grid blocks are fully independent.
    win_rows = (jnp.arange(nb, dtype=jnp.int32)[:, None] * br
                + jnp.arange(rows_blk, dtype=jnp.int32)[None, :])
    x_win = x2d[win_rows].reshape(nb * rows_blk, _LANES)

    kernel = _make_adaptive_filter_kernel(k1, k2, n, br, uniform_w2)
    out2d = pl.pallas_call(
        kernel,
        out_shape=jax.ShapeDtypeStruct((nb * br, _LANES), jnp.float32),
        grid=(nb,),
        in_specs=[
            pl.BlockSpec(memory_space=pltpu.MemorySpace.SMEM),   # scalar params (5,)
            pl.BlockSpec(memory_space=pltpu.MemorySpace.SMEM),   # conv1 taps (k1,)
            pl.BlockSpec(memory_space=pltpu.MemorySpace.SMEM),   # conv2 taps (k2,)
            pl.BlockSpec((rows_blk, _LANES), lambda i: (i, 0)),  # windowed signal
        ],
        out_specs=pl.BlockSpec((br, _LANES), lambda i: (i, 0)),
        compiler_params=pltpu.CompilerParams(
            dimension_semantics=("parallel",),
            vmem_limit_bytes=32 * 1024 * 1024),
        cost_estimate=pl.CostEstimate(
            flops=2 * (k1 + k2) * n, transcendentals=0, bytes_accessed=8 * n),
    )(params, w1.astype(jnp.float32), w2.astype(jnp.float32), x_win)

    # The (-1, 1) view required by the module: drop the row/tail padding.
    return out2d.reshape(-1)[:n].reshape(-1, 1)


# ---------------- pure-JAX reference (independent conv implementation) -------

def _conv1d_same_ref(sig, w):
    k = w.shape[0]
    left = (k - 1) // 2
    right = (k - 1) - left
    return lax.conv_general_dilated(
        sig.reshape(1, 1, -1), w.reshape(1, 1, k),
        window_strides=(1,), padding=[(left, right)],
        dimension_numbers=("NCH", "OIH", "NCH"))[0, 0]


def adaptive_filter_reference(x, *, w1, b1, alpha, w2, b2, size):
    x_flat = jnp.reshape(x, (-1,)).astype(jnp.float32)
    q_lo = jnp.quantile(x_flat, 0.05)
    q_hi = jnp.quantile(x_flat, 0.95)
    xn = (x_flat - q_lo) / (q_hi - q_lo)
    y = _conv1d_same_ref(xn, w1) + b1
    y = jnp.where(y >= 0.0, y, alpha * y)
    z = _conv1d_same_ref(y, w2) + b2
    return z.reshape(-1, 1)


if __name__ == "__main__":
    key = jax.random.PRNGKey(0)
    size = 5                                   # Conv1d kernel sizes: K1=5, K2=4*5+1=21
    x = jax.random.normal(key, (2, 4, 16, 16), dtype=jnp.float32)

    # Deterministic parameter init (shapes mirror AdaptiveFilter.__init__).
    w1 = jnp.array([0.1, 0.2, 0.4, 0.2, 0.1], dtype=jnp.float32)   # weigths_init (size,)
    b1 = jnp.float32(0.03)                                         # smooth_filtKH bias
    alpha = jnp.float32(0.25)                                      # PReLU default init
    k2 = size * 4 + 1
    w2 = jnp.full((k2,), 1.0 / k2, dtype=jnp.float32)              # ones * 1/self.size (frozen)
    b2 = jnp.float32(-0.01)                                        # smooth_filt1 bias

    out = adaptive_filter_forward(x, w1=w1, b1=b1, alpha=alpha, w2=w2, b2=b2, size=size)
    out = jax.block_until_ready(out)

    ref = adaptive_filter_reference(x, w1=w1, b1=b1, alpha=alpha, w2=w2, b2=b2, size=size)
    assert out.shape == (x.size, 1), out.shape
    assert jnp.allclose(out, ref, atol=1e-4, rtol=1e-4), float(jnp.max(jnp.abs(out - ref)))
    print("KERNEL_OK")
</pallas_src>

<mosaic_0001>
module attributes {stable_mosaic.version = 11 : i64} {
  func.func @kernel(%arg0: i32, %arg1: memref<5xf32, #tpu.memory_space<smem>>, %arg2: memref<5xf32, #tpu.memory_space<smem>>, %arg3: memref<21xf32, #tpu.memory_space<smem>>, %arg4: memref<32x128xf32, #tpu.memory_space<vmem>>, %arg5: memref<16x128xf32, #tpu.memory_space<vmem>>) attributes {dimension_semantics = [#tpu.dimension_semantics<parallel>], iteration_bounds = array<i64: 1>, scalar_prefetch = 0 : i64, scratch_operands = 0 : i64, tpu.core_type = #tpu.core_type<tc>, window_params = [{transform_indices = @transform_0, window_bounds = array<i64: 5>}, {transform_indices = @transform_1, window_bounds = array<i64: 5>}, {transform_indices = @transform_2, window_bounds = array<i64: 21>}, {transform_indices = @transform_3, window_bounds = array<i64: 32, 128>}, {transform_indices = @transform_4, window_bounds = array<i64: 16, 128>}]} {
    %c0 = arith.constant 0 : index
    %0 = memref.load %arg1[%c0] : memref<5xf32, #tpu.memory_space<smem>>
    %c1 = arith.constant 1 : index
    %1 = memref.load %arg1[%c1] : memref<5xf32, #tpu.memory_space<smem>>
    %c2 = arith.constant 2 : index
    %2 = memref.load %arg1[%c2] : memref<5xf32, #tpu.memory_space<smem>>
    %c3 = arith.constant 3 : index
    %3 = memref.load %arg1[%c3] : memref<5xf32, #tpu.memory_space<smem>>
    %c4 = arith.constant 4 : index
    %4 = memref.load %arg1[%c4] : memref<5xf32, #tpu.memory_space<smem>>
    %5 = tpu.iota {dimensions = array<i32: 1>} : vector<32x128xi32>
    %c0_0 = arith.constant 0 : index
    %c0_1 = arith.constant 0 : index
    %6 = vector.load %arg4[%c0_0, %c0_1] : memref<32x128xf32, #tpu.memory_space<vmem>>, vector<32x128xf32>
    %7 = tpu.iota {dimensions = array<i32: 0>} : vector<32x128xi32>
    %c16_i32 = arith.constant 16 : i32
    %8 = arith.muli %arg0, %c16_i32 : i32
    %9 = vector.broadcast %8 : i32 to vector<32x128xi32>
    %10 = arith.addi %9, %7 : vector<32x128xi32>
    %c128_i32 = arith.constant 128 : i32
    %11 = vector.broadcast %c128_i32 : i32 to vector<32x128xi32>
    %12 = arith.muli %10, %11 : vector<32x128xi32>
    %13 = arith.addi %12, %5 : vector<32x128xi32>
    %c1024_i32 = arith.constant 1024 : i32
    %14 = vector.broadcast %c1024_i32 : i32 to vector<32x128xi32>
    %15 = arith.cmpi sge, %13, %14 : vector<32x128xi32>
    %c3072_i32 = arith.constant 3072 : i32
    %16 = vector.broadcast %c3072_i32 : i32 to vector<32x128xi32>
    %17 = arith.cmpi slt, %13, %16 : vector<32x128xi32>
    %18 = arith.andi %15, %17 : vector<32x128xi1>
    %19 = arith.subf %1, %0 : f32
    %cst = arith.constant 1.000000e+00 : f32
    %20 = arith.divf %cst, %19 : f32
    %21 = vector.broadcast %0 : f32 to vector<32x128xf32>
    %22 = arith.subf %6, %21 : vector<32x128xf32>
    %23 = vector.broadcast %20 : f32 to vector<32x128xf32>
    %24 = arith.mulf %22, %23 : vector<32x128xf32>
    %cst_2 = arith.constant 0.000000e+00 : f32
    %25 = vector.broadcast %cst_2 : f32 to vector<32x128xf32>
    %26 = arith.select %18, %24, %25 : vector<32x128xi1>, vector<32x128xf32>
    %c31_i32 = arith.constant 31 : i32
    %27 = tpu.dynamic_rotate %26 by %c31_i32 dim 0 : vector<32x128xf32>, i32 -> vector<32x128xf32>
    %c1_i32 = arith.constant 1 : i32
    %28 = tpu.dynamic_rotate %26 by %c1_i32 dim 0 : vector<32x128xf32>, i32 -> vector<32x128xf32>
    %c0_3 = arith.constant 0 : index
    %29 = memref.load %arg2[%c0_3] : memref<5xf32, #tpu.memory_space<smem>>
    %c126_i32 = arith.constant 126 : i32
    %30 = vector.broadcast %c126_i32 : i32 to vector<32x128xi32>
    %31 = arith.cmpi slt, %5, %30 : vector<32x128xi32>
    %32 = arith.select %31, %26, %28 : vector<32x128xi1>, vector<32x128xf32>
    %c2_i32 = arith.constant 2 : i32
    %33 = tpu.dynamic_rotate %32 by %c2_i32 dim 1 : vector<32x128xf32>, i32 -> vector<32x128xf32>
    %34 = vector.broadcast %29 : f32 to vector<32x128xf32>
    %35 = arith.mulf %34, %33 : vector<32x128xf32>
    %c1_4 = arith.constant 1 : index
    %36 = memref.load %arg2[%c1_4] : memref<5xf32, #tpu.memory_space<smem>>
    %c127_i32 = arith.constant 127 : i32
    %37 = vector.broadcast %c127_i32 : i32 to vector<32x128xi32>
    %38 = arith.cmpi slt, %5, %37 : vector<32x128xi32>
    %39 = arith.select %38, %26, %28 : vector<32x128xi1>, vector<32x128xf32>
    %c1_i32_5 = arith.constant 1 : i32
    %40 = tpu.dynamic_rotate %39 by %c1_i32_5 dim 1 : vector<32x128xf32>, i32 -> vector<32x128xf32>
    %41 = vector.broadcast %36 : f32 to vector<32x128xf32>
    %42 = arith.mulf %41, %40 : vector<32x128xf32>
    %43 = arith.addf %35, %42 : vector<32x128xf32>
    %c2_6 = arith.constant 2 : index
    %44 = memref.load %arg2[%c2_6] : memref<5xf32, #tpu.memory_space<smem>>
    %45 = vector.broadcast %44 : f32 to vector<32x128xf32>
    %46 = arith.mulf %45, %26 : vector<32x128xf32>
    %47 = arith.addf %43, %46 : vector<32x128xf32>
    %c3_7 = arith.constant 3 : index
    %48 = memref.load %arg2[%c3_7] : memref<5xf32, #tpu.memory_space<smem>>
    %c1_i32_8 = arith.constant 1 : i32
    %49 = vector.broadcast %c1_i32_8 : i32 to vector<32x128xi32>
    %50 = arith.cmpi sge, %5, %49 : vector<32x128xi32>
    %51 = arith.select %50, %26, %27 : vector<32x128xi1>, vector<32x128xf32>
    %c127_i32_9 = arith.constant 127 : i32
    %52 = tpu.dynamic_rotate %51 by %c127_i32_9 dim 1 : vector<32x128xf32>, i32 -> vector<32x128xf32>
    %53 = vector.broadcast %48 : f32 to vector<32x128xf32>
    %54 = arith.mulf %53, %52 : vector<32x128xf32>
    %55 = arith.addf %47, %54 : vector<32x128xf32>
    %c4_10 = arith.constant 4 : index
    %56 = memref.load %arg2[%c4_10] : memref<5xf32, #tpu.memory_space<smem>>
    %c2_i32_11 = arith.constant 2 : i32
    %57 = vector.broadcast %c2_i32_11 : i32 to vector<32x128xi32>
    %58 = arith.cmpi sge, %5, %57 : vector<32x128xi32>
    %59 = arith.select %58, %26, %27 : vector<32x128xi1>, vector<32x128xf32>
    %c126_i32_12 = arith.constant 126 : i32
    %60 = tpu.dynamic_rotate %59 by %c126_i32_12 dim 1 : vector<32x128xf32>, i32 -> vector<32x128xf32>
    %61 = vector.broadcast %56 : f32 to vector<32x128xf32>
    %62 = arith.mulf %61, %60 : vector<32x128xf32>
    %63 = arith.addf %55, %62 : vector<32x128xf32>
    %64 = vector.broadcast %2 : f32 to vector<32x128xf32>
    %65 = arith.addf %63, %64 : vector<32x128xf32>
    %cst_13 = arith.constant 0.000000e+00 : f32
    %66 = vector.broadcast %cst_13 : f32 to vector<32x128xf32>
    %67 = arith.cmpf oge, %65, %66 : vector<32x128xf32>
    %68 = vector.broadcast %3 : f32 to vector<32x128xf32>
    %69 = arith.mulf %68, %65 : vector<32x128xf32>
    %70 = arith.select %67, %65, %69 : vector<32x128xi1>, vector<32x128xf32>
    %cst_14 = arith.constant 0.000000e+00 : f32
    %71 = vector.broadcast %cst_14 : f32 to vector<32x128xf32>
    %72 = arith.select %18, %70, %71 : vector<32x128xi1>, vector<32x128xf32>
    %c31_i32_15 = arith.constant 31 : i32
    %73 = tpu.dynamic_rotate %72 by %c31_i32_15 dim 0 : vector<32x128xf32>, i32 -> vector<32x128xf32>
    %c1_i32_16 = arith.constant 1 : i32
    %74 = vector.broadcast %c1_i32_16 : i32 to vector<32x128xi32>
    %75 = arith.cmpi sge, %5, %74 : vector<32x128xi32>
    %76 = arith.select %75, %72, %73 : vector<32x128xi1>, vector<32x128xf32>
    %c127_i32_17 = arith.constant 127 : i32
    %77 = tpu.dynamic_rotate %76 by %c127_i32_17 dim 1 : vector<32x128xf32>, i32 -> vector<32x128xf32>
    %78 = arith.addf %72, %77 : vector<32x128xf32>
    %c31_i32_18 = arith.constant 31 : i32
    %79 = tpu.dynamic_rotate %78 by %c31_i32_18 dim 0 : vector<32x128xf32>, i32 -> vector<32x128xf32>
    %c2_i32_19 = arith.constant 2 : i32
    %80 = vector.broadcast %c2_i32_19 : i32 to vector<32x128xi32>
    %81 = arith.cmpi sge, %5, %80 : vector<32x128xi32>
    %82 = arith.select %81, %78, %79 : vector<32x128xi1>, vector<32x128xf32>
    %c126_i32_20 = arith.constant 126 : i32
    %83 = tpu.dynamic_rotate %82 by %c126_i32_20 dim 1 : vector<32x128xf32>, i32 -> vector<32x128xf32>
    %84 = arith.addf %78, %83 : vector<32x128xf32>
    %c31_i32_21 = arith.constant 31 : i32
    %85 = tpu.dynamic_rotate %84 by %c31_i32_21 dim 0 : vector<32x128xf32>, i32 -> vector<32x128xf32>
    %c4_i32 = arith.constant 4 : i32
    %86 = vector.broadcast %c4_i32 : i32 to vector<32x128xi32>
    %87 = arith.cmpi sge, %5, %86 : vector<32x128xi32>
    %88 = arith.select %87, %84, %85 : vector<32x128xi1>, vector<32x128xf32>
    %c124_i32 = arith.constant 124 : i32
    %89 = tpu.dynamic_rotate %88 by %c124_i32 dim 1 : vector<32x128xf32>, i32 -> vector<32x128xf32>
    %90 = arith.addf %84, %89 : vector<32x128xf32>
    %c31_i32_22 = arith.constant 31 : i32
    %91 = tpu.dynamic_rotate %90 by %c31_i32_22 dim 0 : vector<32x128xf32>, i32 -> vector<32x128xf32>
    %c8_i32 = arith.constant 8 : i32
    %92 = vector.broadcast %c8_i32 : i32 to vector<32x128xi32>
    %93 = arith.cmpi sge, %5, %92 : vector<32x128xi32>
    %94 = arith.select %93, %90, %91 : vector<32x128xi1>, vector<32x128xf32>
    %c120_i32 = arith.constant 120 : i32
    %95 = tpu.dynamic_rotate %94 by %c120_i32 dim 1 : vector<32x128xf32>, i32 -> vector<32x128xf32>
    %96 = arith.addf %90, %95 : vector<32x128xf32>
    %c16_i32_23 = arith.constant 16 : i32
    %97 = vector.broadcast %c16_i32_23 : i32 to vector<32x128xi32>
    %98 = arith.cmpi sge, %5, %97 : vector<32x128xi32>
    %99 = arith.select %98, %84, %85 : vector<32x128xi1>, vector<32x128xf32>
    %c112_i32 = arith.constant 112 : i32
    %100 = tpu.dynamic_rotate %99 by %c112_i32 dim 1 : vector<32x128xf32>, i32 -> vector<32x128xf32>
    %101 = arith.addf %96, %100 : vector<32x128xf32>
    %c20_i32 = arith.constant 20 : i32
    %102 = vector.broadcast %c20_i32 : i32 to vector<32x128xi32>
    %103 = arith.cmpi sge, %5, %102 : vector<32x128xi32>
    %104 = arith.select %103, %72, %73 : vector<32x128xi1>, vector<32x128xf32>
    %c108_i32 = arith.constant 108 : i32
    %105 = tpu.dynamic_rotate %104 by %c108_i32 dim 1 : vector<32x128xf32>, i32 -> vector<32x128xf32>
    %106 = arith.addf %101, %105 : vector<32x128xf32>
    %c1_i32_24 = arith.constant 1 : i32
    %107 = tpu.dynamic_rotate %106 by %c1_i32_24 dim 0 : vector<32x128xf32>, i32 -> vector<32x128xf32>
    %c118_i32 = arith.constant 118 : i32
    %108 = vector.broadcast %c118_i32 : i32 to vector<32x128xi32>
    %109 = arith.cmpi slt, %5, %108 : vector<32x128xi32>
    %110 = arith.select %109, %106, %107 : vector<32x128xi1>, vector<32x128xf32>
    %c10_i32 = arith.constant 10 : i32
    %111 = tpu.dynamic_rotate %110 by %c10_i32 dim 1 : vector<32x128xf32>, i32 -> vector<32x128xf32>
    %c0_25 = arith.constant 0 : index
    %112 = memref.load %arg3[%c0_25] : memref<21xf32, #tpu.memory_space<smem>>
    %113 = vector.broadcast %112 : f32 to vector<32x128xf32>
    %114 = arith.mulf %111, %113 : vector<32x128xf32>
    %115 = vector.broadcast %4 : f32 to vector<32x128xf32>
    %116 = arith.addf %114, %115 : vector<32x128xf32>
    %117 = vector.extract_strided_slice %116 {offsets = [8, 0], sizes = [16, 128], strides = [1, 1]} : vector<32x128xf32> to vector<16x128xf32>
    %c0_26 = arith.constant 0 : index
    %c0_27 = arith.constant 0 : index
    %118 = vector.load %arg5[%c0_26, %c0_27] : memref<16x128xf32, #tpu.memory_space<vmem>>, vector<16x128xf32>
    tpu.vector_store %arg5[%c0_26, %c0_27], %117 {strides = array<i32>} : memref<16x128xf32, #tpu.memory_space<vmem>>, vector<16x128xf32>,
    return
  }
  func.func @transform_0(%arg0: i32) -> i32 {
    %c0_i32 = arith.constant 0 : i32
    %c0_i32_0 = arith.constant 0 : i32
    return %c0_i32 : i32
  }
  func.func @transform_1(%arg0: i32) -> i32 {
    %c0_i32 = arith.constant 0 : i32
    %c0_i32_0 = arith.constant 0 : i32
    return %c0_i32 : i32
  }
  func.func @transform_2(%arg0: i32) -> i32 {
    %c0_i32 = arith.constant 0 : i32
    %c0_i32_0 = arith.constant 0 : i32
    return %c0_i32 : i32
  }
  func.func @transform_3(%arg0: i32) -> (i32, i32) {
    %c0_i32 = arith.constant 0 : i32
    %c0_i32_0 = arith.constant 0 : i32
    return %arg0, %c0_i32 : i32, i32
  }
  func.func @transform_4(%arg0: i32) -> (i32, i32) {
    %c0_i32 = arith.constant 0 : i32
    %c0_i32_0 = arith.constant 0 : i32
    return %arg0, %c0_i32 : i32, i32
  }
}

</mosaic_0001>

<llo_original>
// kernel: tpu_custom_call.1
$region0: #{tpu_custom_call.1}
  #allocation0 [shape = 'u32[]', space=smem, size = 0x4, offset = 0x4, fixed_abs, tag = 'smem constant byte address 0x4 - core index']
  #allocation1 [shape = 'u32[144,128]{1,0:T(1,128)}', space=vmem, size = 0x12000, scoped, tag = 'internal scratch']
  %s0 = inlined_call_operand.hbm [shape: f32[5], index: 0, kind: input, shape index: {}]
  %s1 = inlined_call_operand.vmem [shape: f32[5], index: 1, kind: input, shape index: {}]
  %s2 = inlined_call_operand.vmem [shape: f32[21], index: 2, kind: input, shape index: {}]
  %s3 = inlined_call_operand.hbm [shape: f32[32,128], index: 3, kind: input, shape index: {}]
  %s4 = inlined_call_operand.hbm [shape: f32[16,128], index: 4, kind: output, shape index: {}]
  %s5 = sld [smem:[#allocation0]]
  $region42: #{tpu_custom_call.1} parent=0
    _
  %s7 = ssub.s32 1, %s5
  %s8 = scalar_select 0, %s7, %s5
  $region1: #{tpu_custom_call.1} parent=0
    #allocation2 [shape = 'u8[512]{0}', space=smem, size = 0x200, scoped, tag = 'input window, operand 0, single buffered']
    #allocation3 [shape = 's32[1]{0}', space=sflag, size = 0x4, scoped, tag = 'scoped memory for tpu_custom_call.1']
    #allocation4 [shape = 's32[1]{0}', space=sflag, size = 0x4, scoped, tag = 'scoped memory for tpu_custom_call.1']
    #allocation5 [shape = 's32[1]{0}', space=sflag, size = 0x4, scoped, tag = 'scoped memory for tpu_custom_call.1']
    #allocation6 [shape = 's32[1]{0}', space=sflag, size = 0x4, scoped, tag = 'scoped memory for tpu_custom_call.1']
    #allocation7 [shape = 'u8[512]{0}', space=smem, size = 0x200, scoped, tag = 'input window, operand 1, single buffered']
    #allocation8 [shape = 'u8[512]{0}', space=smem, size = 0x200, scoped, tag = 'input window, operand 2, single buffered']
    #allocation9 [shape = 's32[1]{0}', space=sflag, size = 0x4, scoped, tag = 'scoped memory for tpu_custom_call.1']
    #allocation10 [shape = 'u8[16384]{0}', space=vmem, size = 0x4000, scoped, tag = 'input window, operand 3, single buffered']
    #allocation11 [shape = 'u8[8192]{0}', space=vmem, size = 0x2000, scoped, tag = 'output window, operand 0, single buffered']
    %9 = vsyncpa [#allocation5], 0
    %10 = vsyncpa [#allocation6], 0
    %11 = vsyncpa [#allocation9], 0
    %12 = vsyncpa [#allocation3], 0
    %13 = vsyncpa [#allocation4], 0
    // Predicated region
    $region2: #{tpu_custom_call.1} parent=1 // pred_check
      _
    $region3: #{tpu_custom_call.1} parent=1 // pred_check_branch
      %15 = sbr.rel (0) target = $region5
    $region4: #{tpu_custom_call.1} parent=1 // pred_region
      %s17 = ssub.s32 16, 16
      %18 = vsyncadd [#allocation5], %s17
      %21 = dma.hbm_to_smem %s0, 16, [#allocation2], [#allocation5]
    $region5: #{tpu_custom_call.1} parent=1 // pred_fallthru
      _
    // Predicated region
    $region6: #{tpu_custom_call.1} parent=1 // pred_check
      _
    $region7: #{tpu_custom_call.1} parent=1 // pred_check_branch
      %23 = sbr.rel (0) target = $region9
    $region8: #{tpu_custom_call.1} parent=1 // pred_region
      %s25 = ssub.s32 16, 16
      %26 = vsyncadd [#allocation6], %s25
      %s28 = sshll.u32 %s1, 4
      %s29 = int_to_ptr.vmem [resolvable:$true] %s28
      %31 = dma.vmem_to_smem %s29, 16, [#allocation7], [#allocation6]
    $region9: #{tpu_custom_call.1} parent=1 // pred_fallthru
      _
    // Predicated region
    $region10: #{tpu_custom_call.1} parent=1 // pred_check
      _
    $region11: #{tpu_custom_call.1} parent=1 // pred_check_branch
      %33 = sbr.rel (0) target = $region13
    $region12: #{tpu_custom_call.1} parent=1 // pred_region
      %s35 = ssub.s32 16, 16
      %36 = vsyncadd [#allocation9], %s35
      %s38 = sshll.u32 %s2, 4
      %s39 = int_to_ptr.vmem [resolvable:$true] %s38
      %41 = dma.vmem_to_smem %s39, 16, [#allocation8], [#allocation9]
    $region13: #{tpu_custom_call.1} parent=1 // pred_fallthru
      _
    // Predicated region
    $region14: #{tpu_custom_call.1} parent=1 // pred_check
      _
    $region15: #{tpu_custom_call.1} parent=1 // pred_check_branch
      %43 = sbr.rel (0) target = $region17
    $region16: #{tpu_custom_call.1} parent=1 // pred_region
      %s45 = ssub.s32 512, 512
      %46 = vsyncadd [#allocation3], %s45
      %s47 = sshll.u32 [#allocation10], 4
      %s48 = int_to_ptr.vmem [resolvable:$true] %s47
      %53 = dma.hbm_to_vmem [thread:$0]  %s3, 512, %s48, [#allocation3], 128, 128, 8
    $region17: #{tpu_custom_call.1} parent=1 // pred_fallthru
      _
    // Predicated region
    $region18: #{tpu_custom_call.1} parent=1 // pred_check
      _
    $region19: #{tpu_custom_call.1} parent=1 // pred_check_branch
      %55 = sbr.rel (0) target = $region21
    $region20: #{tpu_custom_call.1} parent=1 // pred_region
      %56 = dma.done [#allocation5], 16
    $region21: #{tpu_custom_call.1} parent=1 // pred_fallthru
      _
    // Predicated region
    $region22: #{tpu_custom_call.1} parent=1 // pred_check
      _
    $region23: #{tpu_custom_call.1} parent=1 // pred_check_branch
      %58 = sbr.rel (0) target = $region25
    $region24: #{tpu_custom_call.1} parent=1 // pred_region
      %59 = dma.done [#allocation6], 16
    $region25: #{tpu_custom_call.1} parent=1 // pred_fallthru
      _
    // Predicated region
    $region26: #{tpu_custom_call.1} parent=1 // pred_check
      _
    $region27: #{tpu_custom_call.1} parent=1 // pred_check_branch
      %61 = sbr.rel (0) target = $region29
    $region28: #{tpu_custom_call.1} parent=1 // pred_region
      %62 = dma.done [#allocation9], 16
    $region29: #{tpu_custom_call.1} parent=1 // pred_fallthru
      _
    // Predicated region
    $region30: #{tpu_custom_call.1} parent=1 // pred_check
      _
    $region31: #{tpu_custom_call.1} parent=1 // pred_check_branch
      %64 = sbr.rel (0) target = $region33
    $region32: #{tpu_custom_call.1} parent=1 // pred_region
      %65 = dma.done [#allocation3], 512
    $region33: #{tpu_custom_call.1} parent=1 // pred_fallthru
      _
    %66 = sfence
    %s67 = sld [smem:[#allocation2]]
    %s68 = sld [smem:[#allocation2 + $0x1]]
    %s69 = sld [smem:[#allocation2 + $0x2]]
    %s70 = sld [smem:[#allocation2 + $0x3]]
    %s71 = sld [smem:[#allocation2 + $0x4]]
    %v72 = vlaneseq
    %v73 = vand.u32 %v72, 127
    %v74 = vld [vmem:[#allocation10] sm:$0xff]
    %v75 = vld [vmem:[#allocation10 + $0x8] sm:$0xff]
    %v76 = vld [vmem:[#allocation10 + $0x10] sm:$0xff]
    %v77 = vld [vmem:[#allocation10 + $0x18] sm:$0xff]
    %v78 = vlaneseq
    %v79 = vshrl.u32 %v78, 7
    %v80 = vadd.s32 %v79, 8
    %v81 = vadd.s32 %v79, 16
    %v82 = vadd.s32 %v79, 24
    %s83 = smul.u32 0, 16
    %v84 = vstv %s83
    %v85 = vadd.s32 %v84, %v79
    %v86 = vadd.s32 %v84, %v80
    %v87 = vadd.s32 %v84, %v81
    %v88 = vadd.s32 %v84, %v82
    %v89 = vmul.u32 %v85, 128
    %v90 = vmul.u32 %v86, 128
    %v91 = vmul.u32 %v87, 128
    %v92 = vmul.u32 %v88, 128
    %v93 = vadd.s32 %v89, %v73
    %v94 = vadd.s32 %v90, %v73
    %v95 = vadd.s32 %v91, %v73
    %v96 = vadd.s32 %v92, %v73
    %vm97 = vcmp.ge.s32.totalorder %v93, 1024
    %vm98 = vcmp.ge.s32.totalorder %v94, 1024
    %vm99 = vcmp.ge.s32.totalorder %v95, 1024
    %vm100 = vcmp.ge.s32.totalorder %v96, 1024
    %vm101 = vcmp.lt.s32.totalorder %v93, 3072
    %vm102 = vcmp.lt.s32.totalorder %v94, 3072
    %vm103 = vcmp.lt.s32.totalorder %v95, 3072
    %vm104 = vcmp.lt.s32.totalorder %v96, 3072
    %vm105 = vmand %vm97, %vm101
    %vm106 = vmand %vm98, %vm102
    %vm107 = vmand %vm99, %vm103
    %vm108 = vmand %vm100, %vm104
    %s109 = ssub.f32 %s68, %s67
    %v110 = vstv %s109
    %v111 = vrcp.pop %v110
    %s112 = vtos %v111
    %v113 = vstv %s67
    %v114 = vsub.f32 %v74, %v113
    %v115 = vsub.f32 %v75, %v113
    %v116 = vsub.f32 %v76, %v113
    %v117 = vsub.f32 %v77, %v113
    %v118 = vstv %s112
    %v119 = vmul.f32 %v114, %v118
    %v120 = vmul.f32 %v115, %v118
    %v121 = vmul.f32 %v116, %v118
    %v122 = vmul.f32 %v117, %v118
    %v123 = vsel %vm105, %v119, 0.0
    %v124 = vsel %vm106, %v120, 0.0
    %v125 = vsel %vm107, %v121, 0.0
    %v126 = vsel %vm108, %v122, 0.0
    %v127 = vrot.slane %v123, 1
    %v128 = vrot.slane %v124, 1
    %v129 = vrot.slane %v125, 1
    %v130 = vrot.slane %v126, 1
    %vm131 = vcmp.lt.s32.totalorder %v79, 7
    %v132 = vsel %vm131, %v129, %v130
    %v133 = vsel %vm131, %v128, %v129
    %v134 = vsel %vm131, %v127, %v128
    %v135 = vsel %vm131, %v130, %v127
    %v136 = vrot.slane %v123, 7
    %v137 = vrot.slane %v124, 7
    %v138 = vrot.slane %v125, 7
    %v139 = vrot.slane %v126, 7
    %vm140 = vcmp.lt.s32.totalorder %v79, 1
    %v141 = vsel %vm140, %v138, %v139
    %v142 = vsel %vm140, %v137, %v138
    %v143 = vsel %vm140, %v136, %v137
    %v144 = vsel %vm140, %v139, %v136
    %s145 = sld [smem:[#allocation7]]
    %vm146 = vcmp.lt.s32.totalorder %v73, 126
    %v147 = vsel %vm146, %v123, %v144
    %v148 = vsel %vm146, %v124, %v143
    %v149 = vsel %vm146, %v125, %v142
    %v150 = vsel %vm146, %v126, %v141
    %151 = vrot.lane.b32.xlu0 %v147, 2
    %v152 = vpop.permute.xlu0 %151
    %153 = vrot.lane.b32.xlu0 %v148, 2
    %v154 = vpop.permute.xlu0 %153
    %155 = vrot.lane.b32.xlu0 %v149, 2
    %v156 = vpop.permute.xlu0 %155
    %157 = vrot.lane.b32.xlu0 %v150, 2
    %v158 = vpop.permute.xlu0 %157
    %v159 = vstv %s145
    %v160 = vmul.f32 %v159, %v152
    %v161 = vmul.f32 %v159, %v154
    %v162 = vmul.f32 %v159, %v156
    %v163 = vmul.f32 %v159, %v158
    %s164 = sld [smem:[#allocation7 + $0x1]]
    %vm165 = vcmp.lt.s32.totalorder %v73, 127
    %v166 = vsel %vm165, %v123, %v144
    %v167 = vsel %vm165, %v124, %v143
    %v168 = vsel %vm165, %v125, %v142
    %v169 = vsel %vm165, %v126, %v141
    %170 = vrot.lane.b32.xlu0 %v166, 1
    %v171 = vpop.permute.xlu0 %170
    %172 = vrot.lane.b32.xlu0 %v167, 1
    %v173 = vpop.permute.xlu0 %172
    %174 = vrot.lane.b32.xlu0 %v168, 1
    %v175 = vpop.permute.xlu0 %174
    %176 = vrot.lane.b32.xlu0 %v169, 1
    %v177 = vpop.permute.xlu0 %176
    %v178 = vstv %s164
    %v179 = vmul.f32 %v178, %v171
    %v180 = vmul.f32 %v178, %v173
    %v181 = vmul.f32 %v178, %v175
    %v182 = vmul.f32 %v178, %v177
    %v183 = vadd.f32 %v160, %v179
    %v184 = vadd.f32 %v161, %v180
    %v185 = vadd.f32 %v162, %v181
    %v186 = vadd.f32 %v163, %v182
    %s187 = sld [smem:[#allocation7 + $0x2]]
    %v188 = vstv %s187
    %v189 = vmul.f32 %v188, %v123
    %v190 = vmul.f32 %v188, %v124
    %v191 = vmul.f32 %v188, %v125
    %v192 = vmul.f32 %v188, %v126
    %v193 = vadd.f32 %v183, %v189
    %v194 = vadd.f32 %v184, %v190
    %v195 = vadd.f32 %v185, %v191
    %v196 = vadd.f32 %v186, %v192
    %s197 = sld [smem:[#allocation7 + $0x3]]
    %vm198 = vcmp.ge.s32.totalorder %v73, 1
    %v199 = vsel %vm198, %v123, %v134
    %v200 = vsel %vm198, %v124, %v133
    %v201 = vsel %vm198, %v125, %v132
    %v202 = vsel %vm198, %v126, %v135
    %203 = vrot.lane.b32.xlu0 %v199, 127
    %v204 = vpop.permute.xlu0 %203
    %205 = vrot.lane.b32.xlu0 %v200, 127
    %v206 = vpop.permute.xlu0 %205
    %207 = vrot.lane.b32.xlu0 %v201, 127
    %v208 = vpop.permute.xlu0 %207
    %209 = vrot.lane.b32.xlu0 %v202, 127
    %v210 = vpop.permute.xlu0 %209
    %v211 = vstv %s197
    %v212 = vmul.f32 %v211, %v204
    %v213 = vmul.f32 %v211, %v206
    %v214 = vmul.f32 %v211, %v208
    %v215 = vmul.f32 %v211, %v210
    %v216 = vadd.f32 %v193, %v212
    %v217 = vadd.f32 %v194, %v213
    %v218 = vadd.f32 %v195, %v214
    %v219 = vadd.f32 %v196, %v215
    %s220 = sld [smem:[#allocation7 + $0x4]]
    %vm221 = vcmp.ge.s32.totalorder %v73, 2
    %v222 = vsel %vm221, %v123, %v134
    %v223 = vsel %vm221, %v124, %v133
    %v224 = vsel %vm221, %v125, %v132
    %v225 = vsel %vm221, %v126, %v135
    %226 = vrot.lane.b32.xlu0 %v222, 126
    %v227 = vpop.permute.xlu0 %226
    %228 = vrot.lane.b32.xlu0 %v223, 126
    %v229 = vpop.permute.xlu0 %228
    %230 = vrot.lane.b32.xlu0 %v224, 126
    %v231 = vpop.permute.xlu0 %230
    %232 = vrot.lane.b32.xlu0 %v225, 126
    %v233 = vpop.permute.xlu0 %232
    %v234 = vstv %s220
    %v235 = vmul.f32 %v234, %v227
    %v236 = vmul.f32 %v234, %v229
    %v237 = vmul.f32 %v234, %v231
    %v238 = vmul.f32 %v234, %v233
    %v239 = vadd.f32 %v216, %v235
    %v240 = vadd.f32 %v217, %v236
    %v241 = vadd.f32 %v218, %v237
    %v242 = vadd.f32 %v219, %v238
    %v243 = vstv %s69
    %v244 = vadd.f32 %v239, %v243
    %v245 = vadd.f32 %v240, %v243
    %v246 = vadd.f32 %v241, %v243
    %v247 = vadd.f32 %v242, %v243
    %vm248 = vcmp.ge.f32.partialorder %v244, 0.0
    %vm249 = vcmp.ge.f32.partialorder %v245, 0.0
    %vm250 = vcmp.ge.f32.partialorder %v246, 0.0
    %vm251 = vcmp.ge.f32.partialorder %v247, 0.0
    %v252 = vstv %s70
    %v253 = vmul.f32 %v252, %v244
    %v254 = vmul.f32 %v252, %v245
    %v255 = vmul.f32 %v252, %v246
    %v256 = vmul.f32 %v252, %v247
    %v257 = vsel %vm248, %v244, %v253
    %v258 = vsel %vm249, %v245, %v254
    %v259 = vsel %vm250, %v246, %v255
    %v260 = vsel %vm251, %v247, %v256
    %v261 = vsel %vm105, %v257, 0.0
    %v262 = vsel %vm106, %v258, 0.0
    %v263 = vsel %vm107, %v259, 0.0
    %v264 = vsel %vm108, %v260, 0.0
    %v265 = vrot.slane %v261, 1
    %v266 = vrot.slane %v262, 1
    %v267 = vrot.slane %v263, 1
    %v268 = vrot.slane %v264, 1
    %v269 = vsel %vm131, %v267, %v268
    %v270 = vsel %vm131, %v266, %v267
    %v271 = vsel %vm131, %v265, %v266
    %v272 = vsel %vm131, %v268, %v265
    %v273 = vsel %vm198, %v261, %v271
    %v274 = vsel %vm198, %v262, %v270
    %v275 = vsel %vm198, %v263, %v269
    %v276 = vsel %vm198, %v264, %v272
    %277 = vrot.lane.b32.xlu0 %v273, 127
    %v278 = vpop.permute.xlu0 %277
    %279 = vrot.lane.b32.xlu0 %v274, 127
    %v280 = vpop.permute.xlu0 %279
    %281 = vrot.lane.b32.xlu0 %v275, 127
    %v282 = vpop.permute.xlu0 %281
    %283 = vrot.lane.b32.xlu0 %v276, 127
    %v284 = vpop.permute.xlu0 %283
    %v285 = vadd.f32 %v261, %v278
    %v286 = vadd.f32 %v262, %v280
    %v287 = vadd.f32 %v263, %v282
    %v288 = vadd.f32 %v264, %v284
    %v289 = vrot.slane %v285, 1
    %v290 = vrot.slane %v286, 1
    %v291 = vrot.slane %v287, 1
    %v292 = vrot.slane %v288, 1
    %v293 = vsel %vm131, %v291, %v292
    %v294 = vsel %vm131, %v290, %v291
    %v295 = vsel %vm131, %v289, %v290
    %v296 = vsel %vm131, %v292, %v289
    %v297 = vsel %vm221, %v285, %v295
    %v298 = vsel %vm221, %v286, %v294
    %v299 = vsel %vm221, %v287, %v293
    %v300 = vsel %vm221, %v288, %v296
    %301 = vrot.lane.b32.xlu0 %v297, 126
    %v302 = vpop.permute.xlu0 %301
    %303 = vrot.lane.b32.xlu0 %v298, 126
    %v304 = vpop.permute.xlu0 %303
    %305 = vrot.lane.b32.xlu0 %v299, 126
    %v306 = vpop.permute.xlu0 %305
    %307 = vrot.lane.b32.xlu0 %v300, 126
    %v308 = vpop.permute.xlu0 %307
    %v309 = vadd.f32 %v285, %v302
    %v310 = vadd.f32 %v286, %v304
    %v311 = vadd.f32 %v287, %v306
    %v312 = vadd.f32 %v288, %v308
    %v313 = vrot.slane %v309, 1
    %v314 = vrot.slane %v310, 1
    %v315 = vrot.slane %v311, 1
    %v316 = vrot.slane %v312, 1
    %v317 = vsel %vm131, %v315, %v316
    %v318 = vsel %vm131, %v314, %v315
    %v319 = vsel %vm131, %v313, %v314
    %v320 = vsel %vm131, %v316, %v313
    %vm321 = vcmp.ge.s32.totalorder %v73, 4
    %v322 = vsel %vm321, %v309, %v319
    %v323 = vsel %vm321, %v310, %v318
    %v324 = vsel %vm321, %v311, %v317
    %v325 = vsel %vm321, %v312, %v320
    %326 = vrot.lane.b32.xlu0 %v322, 124
    %v327 = vpop.permute.xlu0 %326
    %328 = vrot.lane.b32.xlu0 %v323, 124
    %v329 = vpop.permute.xlu0 %328
    %330 = vrot.lane.b32.xlu0 %v324, 124
    %v331 = vpop.permute.xlu0 %330
    %332 = vrot.lane.b32.xlu0 %v325, 124
    %v333 = vpop.permute.xlu0 %332
    %v334 = vadd.f32 %v309, %v327
    %v335 = vadd.f32 %v310, %v329
    %v336 = vadd.f32 %v311, %v331
    %v337 = vadd.f32 %v312, %v333
    %v338 = vrot.slane %v334, 1
    %v339 = vrot.slane %v335, 1
    %v340 = vrot.slane %v336, 1
    %v341 = vrot.slane %v337, 1
    %v342 = vsel %vm131, %v340, %v341
    %v343 = vsel %vm131, %v339, %v340
    %v344 = vsel %vm131, %v338, %v339
    %vm345 = vcmp.ge.s32.totalorder %v73, 8
    %v346 = vsel %vm345, %v334, %v344
    %v347 = vsel %vm345, %v335, %v343
    %v348 = vsel %vm345, %v336, %v342
    %349 = vrot.lane.b32.xlu0 %v346, 120
    %v350 = vpop.permute.xlu0 %349
    %351 = vrot.lane.b32.xlu0 %v347, 120
    %v352 = vpop.permute.xlu0 %351
    %353 = vrot.lane.b32.xlu0 %v348, 120
    %v354 = vpop.permute.xlu0 %353
    %v355 = vadd.f32 %v334, %v350
    %v356 = vadd.f32 %v335, %v352
    %v357 = vadd.f32 %v336, %v354
    %vm358 = vcmp.ge.s32.totalorder %v73, 16
    %v359 = vsel %vm358, %v309, %v319
    %v360 = vsel %vm358, %v310, %v318
    %v361 = vsel %vm358, %v311, %v317
    %362 = vrot.lane.b32.xlu0 %v359, 112
    %v363 = vpop.permute.xlu0 %362
    %364 = vrot.lane.b32.xlu0 %v360, 112
    %v365 = vpop.permute.xlu0 %364
    %366 = vrot.lane.b32.xlu0 %v361, 112
    %v367 = vpop.permute.xlu0 %366
    %v368 = vadd.f32 %v355, %v363
    %v369 = vadd.f32 %v356, %v365
    %v370 = vadd.f32 %v357, %v367
    %vm371 = vcmp.ge.s32.totalorder %v73, 20
    %v372 = vsel %vm371, %v261, %v271
    %v373 = vsel %vm371, %v262, %v270
    %v374 = vsel %vm371, %v263, %v269
    %375 = vrot.lane.b32.xlu0 %v372, 108
    %v376 = vpop.permute.xlu0 %375
    %377 = vrot.lane.b32.xlu0 %v373, 108
    %v378 = vpop.permute.xlu0 %377
    %379 = vrot.lane.b32.xlu0 %v374, 108
    %v380 = vpop.permute.xlu0 %379
    %v381 = vadd.f32 %v368, %v376
    %v382 = vadd.f32 %v369, %v378
    %v383 = vadd.f32 %v370, %v380
    %v384 = vrot.slane %v381, 7
    %v385 = vrot.slane %v382, 7
    %v386 = vrot.slane %v383, 7
    %v387 = vsel %vm140, %v385, %v386
    %v388 = vsel %vm140, %v384, %v385
    %vm389 = vcmp.lt.s32.totalorder %v73, 118
    %v390 = vsel %vm389, %v382, %v388
    %v391 = vsel %vm389, %v383, %v387
    %392 = vrot.lane.b32.xlu0 %v390, 10
    %v393 = vpop.permute.xlu0 %392
    %394 = vrot.lane.b32.xlu0 %v391, 10
    %v395 = vpop.permute.xlu0 %394
    %s396 = sld [smem:[#allocation8]]
    %v397 = vstv %s396
    %v398 = vmul.f32 %v393, %v397
    %v399 = vmul.f32 %v395, %v397
    %v400 = vstv %s71
    %v401 = vadd.f32 %v398, %v400
    %v402 = vadd.f32 %v399, %v400
    %403 = vst [vmem:[#allocation11] sm:$0xff] %v401
    %404 = vst [vmem:[#allocation11 + $0x8] sm:$0xff] %v402
    // Predicated region
    $region34: #{tpu_custom_call.1} parent=1 // pred_check
      _
    $region35: #{tpu_custom_call.1} parent=1 // pred_check_branch
      %406 = sbr.rel (0) target = $region37
    $region36: #{tpu_custom_call.1} parent=1 // pred_region
      %s408 = ssub.s32 256, 256
      %409 = vsyncadd [#allocation4], %s408
      %s410 = sshll.u32 [#allocation11], 4
      %s411 = int_to_ptr.vmem [resolvable:$true] %s410
      %416 = dma.vmem_to_hbm [thread:$0]  %s411, 256, %s4, [#allocation4], 128, 128, 8
    $region37: #{tpu_custom_call.1} parent=1 // pred_fallthru
      _
    // Predicated region
    $region38: #{tpu_custom_call.1} parent=1 // pred_check
      _
    $region39: #{tpu_custom_call.1} parent=1 // pred_check_branch
      %418 = sbr.rel (0) target = $region41
    $region40: #{tpu_custom_call.1} parent=1 // pred_region
      %419 = dma.done [#allocation4], 256
    $region41: #{tpu_custom_call.1} parent=1 // pred_fallthru
      _
    %420 = vsyncpa [#allocation3], 1
    %421 = vsyncpa [#allocation4], 1
    %422 = vsyncpa [#allocation5], 1
    %423 = vsyncpa [#allocation6], 1
    %424 = vsyncpa [#allocation9], 1

</llo_original>
